<compile_context>
chip_gen: v7x
topology: tpu7x:2x2x1
jax: 0.10.0
libtpu: 0.0.40
codegen_flags: <defaults>
</compile_context>

<pallas_src>
import functools

import jax
import jax.numpy as jnp
from jax.experimental import pallas as pl
from jax.experimental.pallas import tpu as pltpu


LANE = 128


def _round_up(x, m=LANE):
    return ((x + m - 1) // m) * m


def _pad_last(a, target):
    pad = target - a.shape[-1]
    if pad == 0:
        return a
    widths = [(0, 0)] * (a.ndim - 1) + [(0, pad)]
    return jnp.pad(a, widths)


# ----------------------------------------------------------------------------
# Shared fused step (runs entirely in padded / lane-aligned space).
#   obs : (B, Dp)   h : (B, Hp)
#   w1  : (Dp, Hp)  b1 : (1, Hp)
#   wg  : (2*Hp, 4*Hp)  gate blocks [r | z | i_n | h_n], each Hp lanes wide
#   bg  : (1, 4*Hp)     (r/z biases are bih+bhh pre-summed)
#   w2  : (Hp, Ap)  b2 : (1, Ap)
# Padded lanes stay exactly zero across steps (zero weight rows/cols + zero h0
# padding), so no masking is needed anywhere.
# ----------------------------------------------------------------------------
def _fused_step(obs, h, w1, b1, wg, bg, w2, b2):
    Hp = h.shape[-1]
    # fc1 + relu
    x = jnp.maximum(jnp.dot(obs, w1, preferred_element_type=jnp.float32) + b1, 0.0)
    # single fused GRU matmul on lhs = [x | h]
    g = jnp.dot(jnp.concatenate([x, h], axis=-1), wg,
                preferred_element_type=jnp.float32) + bg
    r = jax.nn.sigmoid(g[:, 0 * Hp:1 * Hp])
    z = jax.nn.sigmoid(g[:, 1 * Hp:2 * Hp])
    n = jnp.tanh(g[:, 2 * Hp:3 * Hp] + r * g[:, 3 * Hp:4 * Hp])
    h_new = (1.0 - z) * n + z * h
    # fc2
    q = jnp.dot(h_new, w2, preferred_element_type=jnp.float32) + b2
    return q, h_new


# ----------------------------------------------------------------------------
# Kernels
# ----------------------------------------------------------------------------
def _rnn_step_kernel(obs_ref, h_ref, w1_ref, b1_ref, wg_ref, bg_ref,
                     w2_ref, b2_ref, q_ref, hout_ref):
    q, h_new = _fused_step(obs_ref[...], h_ref[...],
                           w1_ref[...], b1_ref[...], wg_ref[...], bg_ref[...],
                           w2_ref[...], b2_ref[...])
    q_ref[...] = q
    hout_ref[...] = h_new


def _rnn_seq_kernel(obs_ref, h0_ref, w1_ref, b1_ref, wg_ref, bg_ref,
                    w2_ref, b2_ref, q_ref, hlast_ref, h_scr):
    t = pl.program_id(0)

    @pl.when(t == 0)
    def _():
        h_scr[...] = h0_ref[...]

    q, h_new = _fused_step(obs_ref[0], h_scr[...],
                           w1_ref[...], b1_ref[...], wg_ref[...], bg_ref[...],
                           w2_ref[...], b2_ref[...])
    h_scr[...] = h_new
    q_ref[0] = q

    @pl.when(t == pl.num_programs(0) - 1)
    def _():
        hlast_ref[...] = h_new


# ----------------------------------------------------------------------------
# Parameter init (PyTorch-style uniform) and packing into the fused/padded
# layout the kernels consume.
# ----------------------------------------------------------------------------
def init_params(key, input_shape, hidden_dim, n_actions):
    ks = jax.random.split(key, 10)

    def u(k, shape, fan_in):
        bound = 1.0 / jnp.sqrt(jnp.float32(fan_in))
        return jax.random.uniform(k, shape, jnp.float32, -bound, bound)

    return {
        "w1": u(ks[0], (input_shape, hidden_dim), input_shape),
        "b1": u(ks[1], (1, hidden_dim), input_shape),
        "wih": u(ks[2], (hidden_dim, 3 * hidden_dim), hidden_dim),
        "whh": u(ks[3], (hidden_dim, 3 * hidden_dim), hidden_dim),
        "bih": u(ks[4], (1, 3 * hidden_dim), hidden_dim),
        "bhh": u(ks[5], (1, 3 * hidden_dim), hidden_dim),
        "w2": u(ks[6], (hidden_dim, n_actions), hidden_dim),
        "b2": u(ks[7], (1, n_actions), hidden_dim),
    }


def pack_params(params, *, input_dim, hidden_dim, n_actions):
    D, H, A = input_dim, hidden_dim, n_actions
    Dp, Hp, Ap = _round_up(D), _round_up(H), _round_up(A)

    w1p = jnp.zeros((Dp, Hp), jnp.float32).at[:D, :H].set(params["w1"])
    b1p = jnp.zeros((1, Hp), jnp.float32).at[:, :H].set(params["b1"])

    wih, whh = params["wih"], params["whh"]
    bih, bhh = params["bih"], params["bhh"]

    # Fused GRU weight: rows [x | h] (each Hp), cols [r | z | i_n | h_n] (each Hp).
    wg = jnp.zeros((2 * Hp, 4 * Hp), jnp.float32)
    wg = wg.at[:H, 0 * Hp:0 * Hp + H].set(wih[:, 0:H])          # r   (x part)
    wg = wg.at[:H, 1 * Hp:1 * Hp + H].set(wih[:, H:2 * H])      # z   (x part)
    wg = wg.at[:H, 2 * Hp:2 * Hp + H].set(wih[:, 2 * H:3 * H])  # i_n (x part)
    wg = wg.at[Hp:Hp + H, 0 * Hp:0 * Hp + H].set(whh[:, 0:H])          # r   (h part)
    wg = wg.at[Hp:Hp + H, 1 * Hp:1 * Hp + H].set(whh[:, H:2 * H])      # z   (h part)
    wg = wg.at[Hp:Hp + H, 3 * Hp:3 * Hp + H].set(whh[:, 2 * H:3 * H])  # h_n (h part)

    bg = jnp.zeros((1, 4 * Hp), jnp.float32)
    bg = bg.at[:, 0 * Hp:0 * Hp + H].set(bih[:, 0:H] + bhh[:, 0:H])
    bg = bg.at[:, 1 * Hp:1 * Hp + H].set(bih[:, H:2 * H] + bhh[:, H:2 * H])
    bg = bg.at[:, 2 * Hp:2 * Hp + H].set(bih[:, 2 * H:3 * H])
    bg = bg.at[:, 3 * Hp:3 * Hp + H].set(bhh[:, 2 * H:3 * H])

    w2p = jnp.zeros((Hp, Ap), jnp.float32).at[:H, :A].set(params["w2"])
    b2p = jnp.zeros((1, Ap), jnp.float32).at[:, :A].set(params["b2"])

    return {"w1": w1p, "b1": b1p, "wg": wg, "bg": bg, "w2": w2p, "b2": b2p}


def _logical_cost(T, B, D, H, A):
    flops = 2 * T * B * (D * H + (2 * H) * (3 * H) + H * A)
    transcendentals = 3 * T * B * H
    return flops, transcendentals


# ----------------------------------------------------------------------------
# Wrappers
# ----------------------------------------------------------------------------
def rnn_forward(obs, hidden_state, packed, *, hidden_dim, n_actions):
    """Single step: matches RNN.forward(obs, hidden_state) -> (q, h)."""
    B, D = obs.shape
    Dp, Hp = packed["w1"].shape
    Ap = packed["w2"].shape[1]

    obs_p = _pad_last(obs, Dp)
    h_p = _pad_last(hidden_state.reshape(-1, hidden_dim), Hp)

    operands = (obs_p, h_p, packed["w1"], packed["b1"], packed["wg"],
                packed["bg"], packed["w2"], packed["b2"])
    full = lambda a: pl.BlockSpec(a.shape, lambda: (0,) * a.ndim)

    flops, trans = _logical_cost(1, B, D, hidden_dim, n_actions)
    cost = pl.CostEstimate(
        flops=flops, transcendentals=trans,
        bytes_accessed=sum(int(a.size) * a.dtype.itemsize for a in operands)
        + 4 * B * (Ap + Hp))

    q_p, h_out = pl.pallas_call(
        _rnn_step_kernel,
        out_shape=(jax.ShapeDtypeStruct((B, Ap), jnp.float32),
                   jax.ShapeDtypeStruct((B, Hp), jnp.float32)),
        in_specs=[full(a) for a in operands],
        out_specs=(pl.BlockSpec((B, Ap), lambda: (0, 0)),
                   pl.BlockSpec((B, Hp), lambda: (0, 0))),
        input_output_aliases={1: 1},   # hidden_state input aliases h output
        cost_estimate=cost,
    )(*operands)
    return q_p[:, :n_actions], h_out[:, :hidden_dim]


def rnn_forward_sequence(obs_seq, h0, packed, *, hidden_dim, n_actions):
    """T module-forwards fused into ONE pallas_call.

    Grid over T, weights resident in VMEM, h carried in scratch; returns
    per-step q (T, B, A) and the final hidden state (B, H).
    """
    T, B, D = obs_seq.shape
    Dp, Hp = packed["w1"].shape
    Ap = packed["w2"].shape[1]

    obs_p = _pad_last(obs_seq, Dp)                         # (T, B, Dp)
    h0_p = _pad_last(h0.reshape(-1, hidden_dim), Hp)       # (B, Hp)

    operands = (obs_p, h0_p, packed["w1"], packed["b1"], packed["wg"],
                packed["bg"], packed["w2"], packed["b2"])

    def resident(a):
        return pl.BlockSpec(a.shape, lambda t: (0,) * a.ndim)

    in_specs = [pl.BlockSpec((1, B, Dp), lambda t: (t, 0, 0))]
    in_specs += [resident(a) for a in operands[1:]]

    flops, trans = _logical_cost(T, B, D, hidden_dim, n_actions)
    cost = pl.CostEstimate(
        flops=flops, transcendentals=trans,
        bytes_accessed=sum(int(a.size) * a.dtype.itemsize for a in operands)
        + 4 * (T * B * Ap + B * Hp))

    q_p, h_last = pl.pallas_call(
        _rnn_seq_kernel,
        out_shape=(jax.ShapeDtypeStruct((T, B, Ap), jnp.float32),
                   jax.ShapeDtypeStruct((B, Hp), jnp.float32)),
        grid_spec=pltpu.PrefetchScalarGridSpec(
            num_scalar_prefetch=0,
            grid=(T,),
            in_specs=in_specs,
            out_specs=(pl.BlockSpec((1, B, Ap), lambda t: (t, 0, 0)),
                       pl.BlockSpec((B, Hp), lambda t: (0, 0))),
            scratch_shapes=[pltpu.VMEM((B, Hp), jnp.float32)],
        ),
        compiler_params=pltpu.CompilerParams(
            dimension_semantics=("arbitrary",)),   # recurrence over T
        cost_estimate=cost,
    )(*operands)
    return q_p[:, :, :n_actions], h_last[:, :hidden_dim]


# ----------------------------------------------------------------------------
# Pure-JAX references (mirror PyTorch semantics)
# ----------------------------------------------------------------------------
def rnn_forward_ref(obs, hidden_state, params, *, hidden_dim):
    x = jnp.maximum(obs @ params["w1"] + params["b1"], 0.0)
    h_in = hidden_state.reshape(-1, hidden_dim)
    gi = x @ params["wih"] + params["bih"]
    gh = h_in @ params["whh"] + params["bhh"]
    H = hidden_dim
    r = jax.nn.sigmoid(gi[:, :H] + gh[:, :H])
    z = jax.nn.sigmoid(gi[:, H:2 * H] + gh[:, H:2 * H])
    n = jnp.tanh(gi[:, 2 * H:] + r * gh[:, 2 * H:])
    h = (1.0 - z) * n + z * h_in
    q = h @ params["w2"] + params["b2"]
    return q, h


def rnn_forward_sequence_ref(obs_seq, h0, params, *, hidden_dim):
    h = h0.reshape(-1, hidden_dim)
    qs = []
    for t in range(obs_seq.shape[0]):
        q, h = rnn_forward_ref(obs_seq[t], h, params, hidden_dim=hidden_dim)
        qs.append(q)
    return jnp.stack(qs, axis=0), h


if __name__ == "__main__":
    B, D_IN, HIDDEN, N_ACTIONS, T = 8, 32, 32, 16, 12

    key = jax.random.PRNGKey(0)
    k_obs, k_seq, k_h, k_params = jax.random.split(key, 4)

    obs = jax.random.normal(k_obs, (B, D_IN), jnp.float32)
    obs_seq = jax.random.normal(k_seq, (T, B, D_IN), jnp.float32)
    hidden_state = jax.random.normal(k_h, (B, HIDDEN), jnp.float32)

    params = init_params(k_params, D_IN, HIDDEN, N_ACTIONS)
    packed = pack_params(params, input_dim=D_IN, hidden_dim=HIDDEN,
                         n_actions=N_ACTIONS)

    # ---- single step (exact module forward) ----
    q, h = rnn_forward(obs, hidden_state, packed,
                       hidden_dim=HIDDEN, n_actions=N_ACTIONS)
    jax.block_until_ready((q, h))
    q_ref, h_ref = rnn_forward_ref(obs, hidden_state, params, hidden_dim=HIDDEN)
    assert jnp.allclose(q, q_ref, atol=1e-4, rtol=1e-4), "single-step q mismatch"
    assert jnp.allclose(h, h_ref, atol=1e-4, rtol=1e-4), "single-step h mismatch"

    # ---- fused sequence (T steps in one pallas_call) ----
    q_seq, h_last = rnn_forward_sequence(obs_seq, hidden_state, packed,
                                         hidden_dim=HIDDEN, n_actions=N_ACTIONS)
    jax.block_until_ready((q_seq, h_last))
    q_seq_ref, h_last_ref = rnn_forward_sequence_ref(
        obs_seq, hidden_state, params, hidden_dim=HIDDEN)
    assert jnp.allclose(q_seq, q_seq_ref, atol=1e-4, rtol=1e-4), "seq q mismatch"
    assert jnp.allclose(h_last, h_last_ref, atol=1e-4, rtol=1e-4), "seq h mismatch"

    print("KERNEL_OK")
</pallas_src>

<mosaic_0001>
module attributes {stable_mosaic.version = 11 : i64} {
  func.func @_rnn_step_kernel(%arg0: memref<8x128xf32, #tpu.memory_space<vmem>>, %arg1: memref<8x128xf32, #tpu.memory_space<vmem>>, %arg2: memref<128x128xf32, #tpu.memory_space<vmem>>, %arg3: memref<1x128xf32, #tpu.memory_space<vmem>>, %arg4: memref<256x512xf32, #tpu.memory_space<vmem>>, %arg5: memref<1x512xf32, #tpu.memory_space<vmem>>, %arg6: memref<128x128xf32, #tpu.memory_space<vmem>>, %arg7: memref<1x128xf32, #tpu.memory_space<vmem>>, %arg8: memref<8x128xf32, #tpu.memory_space<vmem>>, %arg9: memref<8x128xf32, #tpu.memory_space<vmem>>) attributes {dimension_semantics = [], scalar_prefetch = 0 : i64, scratch_operands = 0 : i64, tpu.core_type = #tpu.core_type<tc>} {
    %c0 = arith.constant 0 : index
    %c0_0 = arith.constant 0 : index
    %0 = vector.load %arg0[%c0, %c0_0] : memref<8x128xf32, #tpu.memory_space<vmem>>, vector<8x128xf32>
    %c0_1 = arith.constant 0 : index
    %c0_2 = arith.constant 0 : index
    %1 = vector.load %arg1[%c0_1, %c0_2] : memref<8x128xf32, #tpu.memory_space<vmem>>, vector<8x128xf32>
    %c0_3 = arith.constant 0 : index
    %c0_4 = arith.constant 0 : index
    %2 = vector.load %arg2[%c0_3, %c0_4] : memref<128x128xf32, #tpu.memory_space<vmem>>, vector<128x128xf32>
    %c0_5 = arith.constant 0 : index
    %c0_6 = arith.constant 0 : index
    %3 = vector.load %arg3[%c0_5, %c0_6] : memref<1x128xf32, #tpu.memory_space<vmem>>, vector<1x128xf32>
    %c0_7 = arith.constant 0 : index
    %c0_8 = arith.constant 0 : index
    %4 = vector.load %arg4[%c0_7, %c0_8] : memref<256x512xf32, #tpu.memory_space<vmem>>, vector<256x512xf32>
    %c0_9 = arith.constant 0 : index
    %c0_10 = arith.constant 0 : index
    %5 = vector.load %arg5[%c0_9, %c0_10] : memref<1x512xf32, #tpu.memory_space<vmem>>, vector<1x512xf32>
    %c0_11 = arith.constant 0 : index
    %c0_12 = arith.constant 0 : index
    %6 = vector.load %arg6[%c0_11, %c0_12] : memref<128x128xf32, #tpu.memory_space<vmem>>, vector<128x128xf32>
    %c0_13 = arith.constant 0 : index
    %c0_14 = arith.constant 0 : index
    %7 = vector.load %arg7[%c0_13, %c0_14] : memref<1x128xf32, #tpu.memory_space<vmem>>, vector<1x128xf32>
    %cst = arith.constant dense<0.000000e+00> : vector<8x128xf32>
    %8 = tpu.matmul %0, %2, %cst {dimension_numbers = #tpu.dot_dimension_numbers<[1], [0], [0], [1], [0, 0, 1, 1], [], []>} : vector<8x128xf32>, vector<128x128xf32>, vector<8x128xf32> -> vector<8x128xf32>
    %9 = vector.broadcast %3 : vector<1x128xf32> to vector<8x128xf32>
    %10 = arith.addf %8, %9 : vector<8x128xf32>
    %cst_15 = arith.constant 0.000000e+00 : f32
    %11 = vector.broadcast %cst_15 : f32 to vector<8x128xf32>
    %12 = arith.maximumf %10, %11 : vector<8x128xf32>
    %13 = tpu.concatenate %12, %1 in 1 : vector<8x128xf32>, vector<8x128xf32> -> vector<8x256xf32>
    %cst_16 = arith.constant dense<0.000000e+00> : vector<8x512xf32>
    %14 = tpu.matmul %13, %4, %cst_16 {dimension_numbers = #tpu.dot_dimension_numbers<[1], [0], [0], [1], [0, 0, 1, 1], [], []>} : vector<8x256xf32>, vector<256x512xf32>, vector<8x512xf32> -> vector<8x512xf32>
    %15 = vector.broadcast %5 : vector<1x512xf32> to vector<8x512xf32>
    %16 = arith.addf %14, %15 : vector<8x512xf32>
    %17 = vector.extract_strided_slice %16 {offsets = [0, 0], sizes = [8, 128], strides = [1, 1]} : vector<8x512xf32> to vector<8x128xf32>
    %18 = arith.negf %17 : vector<8x128xf32>
    %19 = math.exp %18 : vector<8x128xf32>
    %cst_17 = arith.constant 1.000000e+00 : f32
    %20 = vector.broadcast %cst_17 : f32 to vector<8x128xf32>
    %21 = arith.addf %20, %19 : vector<8x128xf32>
    %22 = arith.divf %20, %21 : vector<8x128xf32>
    %23 = vector.extract_strided_slice %16 {offsets = [0, 128], sizes = [8, 128], strides = [1, 1]} : vector<8x512xf32> to vector<8x128xf32>
    %24 = arith.negf %23 : vector<8x128xf32>
    %25 = math.exp %24 : vector<8x128xf32>
    %cst_18 = arith.constant 1.000000e+00 : f32
    %26 = vector.broadcast %cst_18 : f32 to vector<8x128xf32>
    %27 = arith.addf %26, %25 : vector<8x128xf32>
    %28 = arith.divf %26, %27 : vector<8x128xf32>
    %29 = vector.extract_strided_slice %16 {offsets = [0, 256], sizes = [8, 128], strides = [1, 1]} : vector<8x512xf32> to vector<8x128xf32>
    %30 = vector.extract_strided_slice %16 {offsets = [0, 384], sizes = [8, 128], strides = [1, 1]} : vector<8x512xf32> to vector<8x128xf32>
    %31 = arith.mulf %22, %30 : vector<8x128xf32>
    %32 = arith.addf %29, %31 : vector<8x128xf32>
    %33 = math.tanh %32 : vector<8x128xf32>
    %cst_19 = arith.constant 1.000000e+00 : f32
    %34 = vector.broadcast %cst_19 : f32 to vector<8x128xf32>
    %35 = arith.subf %34, %28 : vector<8x128xf32>
    %36 = arith.mulf %35, %33 : vector<8x128xf32>
    %37 = arith.mulf %28, %1 : vector<8x128xf32>
    %38 = arith.addf %36, %37 : vector<8x128xf32>
    %cst_20 = arith.constant dense<0.000000e+00> : vector<8x128xf32>
    %39 = tpu.matmul %38, %6, %cst_20 {dimension_numbers = #tpu.dot_dimension_numbers<[1], [0], [0], [1], [0, 0, 1, 1], [], []>} : vector<8x128xf32>, vector<128x128xf32>, vector<8x128xf32> -> vector<8x128xf32>
    %40 = vector.broadcast %7 : vector<1x128xf32> to vector<8x128xf32>
    %41 = arith.addf %39, %40 : vector<8x128xf32>
    %c0_21 = arith.constant 0 : index
    %c0_22 = arith.constant 0 : index
    %42 = vector.load %arg8[%c0_21, %c0_22] : memref<8x128xf32, #tpu.memory_space<vmem>>, vector<8x128xf32>
    tpu.vector_store %arg8[%c0_21, %c0_22], %41 {strides = array<i32>} : memref<8x128xf32, #tpu.memory_space<vmem>>, vector<8x128xf32>,
    %c0_23 = arith.constant 0 : index
    %c0_24 = arith.constant 0 : index
    %43 = vector.load %arg9[%c0_23, %c0_24] : memref<8x128xf32, #tpu.memory_space<vmem>>, vector<8x128xf32>
    tpu.vector_store %arg9[%c0_23, %c0_24], %38 {strides = array<i32>} : memref<8x128xf32, #tpu.memory_space<vmem>>, vector<8x128xf32>,
    return
  }
}

</mosaic_0001>

<llo_original>
// kernel: tpu_custom_call.1
$region0: #{tpu_custom_call.1}
  #allocation0 [shape = 'u32[]', space=smem, size = 0x4, offset = 0x4, fixed_abs, tag = 'smem constant byte address 0x4 - core index']
  #allocation1 [shape = 'u32[144,128]{1,0:T(1,128)}', space=vmem, size = 0x12000, scoped, tag = 'internal scratch']
  %s0 = inlined_call_operand.vmem [shape: f32[8,128], index: 0, kind: input, shape index: {}]
  %s1 = inlined_call_operand.hbm [shape: f32[8,128], index: 1, kind: input, shape index: {}, may-alias: {1,9}]
  %s2 = inlined_call_operand.hbm [shape: f32[128,128], index: 2, kind: input, shape index: {}]
  %s3 = inlined_call_operand.vmem [shape: f32[1,128], index: 3, kind: input, shape index: {}]
  %s4 = inlined_call_operand.hbm [shape: f32[256,512], index: 4, kind: input, shape index: {}]
  %s5 = inlined_call_operand.vmem [shape: f32[1,512], index: 5, kind: input, shape index: {}]
  %s6 = inlined_call_operand.hbm [shape: f32[128,128], index: 6, kind: input, shape index: {}]
  %s7 = inlined_call_operand.vmem [shape: f32[1,128], index: 7, kind: input, shape index: {}]
  %s8 = inlined_call_operand.hbm [shape: f32[8,128], index: 8, kind: output, shape index: {0}]
  %s9 = inlined_call_operand.hbm [shape: f32[8,128], index: 9, kind: output, shape index: {1}, may-alias: {1,9}]
  %10 = xla_tuple %s8, %s9
  %s11 = sld [smem:[#allocation0]]
  $region66: #{tpu_custom_call.1} parent=0
    _
  %s13 = ssub.s32 1, %s11
  %s14 = scalar_select 0, %s13, %s11
  $region1: #{tpu_custom_call.1} parent=0
    #allocation2 [shape = 'u8[4096]{0}', space=vmem, size = 0x1000, scoped, tag = 'input window, operand 1, single buffered']
    #allocation3 [shape = 's32[1]{0}', space=sflag, size = 0x4, scoped, tag = 'scoped memory for tpu_custom_call.1']
    #allocation4 [shape = 's32[1]{0}', space=sflag, size = 0x4, scoped, tag = 'scoped memory for tpu_custom_call.1']
    #allocation5 [shape = 'u8[65536]{0}', space=vmem, size = 0x10000, scoped, tag = 'input window, operand 2, single buffered']
    #allocation6 [shape = 's32[1]{0}', space=sflag, size = 0x4, scoped, tag = 'scoped memory for tpu_custom_call.1']
    #allocation7 [shape = 'u8[524288]{0}', space=vmem, size = 0x80000, scoped, tag = 'input window, operand 4, single buffered']
    #allocation8 [shape = 'u8[65536]{0}', space=vmem, size = 0x10000, scoped, tag = 'input window, operand 6, single buffered']
    #allocation9 [shape = 's32[1]{0}', space=sflag, size = 0x4, scoped, tag = 'scoped memory for tpu_custom_call.1']
    #allocation10 [shape = 'u8[4096]{0}', space=vmem, size = 0x1000, scoped, tag = 'output window, operand 0, single buffered']
    #allocation11 [shape = 'u8[4096]{0}', space=vmem, size = 0x1000, scoped, tag = 'output window, operand 1, single buffered']
    #allocation12 [shape = 's32[1]{0}', space=sflag, size = 0x4, scoped, tag = 'scoped memory for tpu_custom_call.1']
    %15 = vsyncpa [#allocation3], 0
    %16 = vsyncpa [#allocation6], 0
    %17 = vsyncpa [#allocation9], 0
    %18 = vsyncpa [#allocation4], 0
    %19 = vsyncpa [#allocation12], 0
    // Predicated region
    $region2: #{tpu_custom_call.1} parent=1 // pred_check
      _
    $region3: #{tpu_custom_call.1} parent=1 // pred_check_branch
      %21 = sbr.rel (0) target = $region5
    $region4: #{tpu_custom_call.1} parent=1 // pred_region
      _
    $region5: #{tpu_custom_call.1} parent=1 // pred_fallthru
      _
    // Predicated region
    $region6: #{tpu_custom_call.1} parent=1 // pred_check
      _
    $region7: #{tpu_custom_call.1} parent=1 // pred_check_branch
      %23 = sbr.rel (0) target = $region9
    $region8: #{tpu_custom_call.1} parent=1 // pred_region
      %s25 = ssub.s32 128, 128
      %26 = vsyncadd [#allocation3], %s25
      %s28 = sshll.u32 [#allocation2], 4
      %s29 = int_to_ptr.vmem [resolvable:$true] %s28
      %31 = dma.hbm_to_vmem [thread:$0]  %s1, 128, %s29, [#allocation3]
    $region9: #{tpu_custom_call.1} parent=1 // pred_fallthru
      _
    // Predicated region
    $region10: #{tpu_custom_call.1} parent=1 // pred_check
      _
    $region11: #{tpu_custom_call.1} parent=1 // pred_check_branch
      %33 = sbr.rel (0) target = $region13
    $region12: #{tpu_custom_call.1} parent=1 // pred_region
      %s35 = ssub.s32 2048, 2048
      %36 = vsyncadd [#allocation6], %s35
      %s37 = sshll.u32 [#allocation5], 4
      %s38 = int_to_ptr.vmem [resolvable:$true] %s37
      %43 = dma.hbm_to_vmem [thread:$0]  %s2, 2048, %s38, [#allocation6], 128, 128, 8
    $region13: #{tpu_custom_call.1} parent=1 // pred_fallthru
      _
    // Predicated region
    $region14: #{tpu_custom_call.1} parent=1 // pred_check
      _
    $region15: #{tpu_custom_call.1} parent=1 // pred_check_branch
      %45 = sbr.rel (0) target = $region17
    $region16: #{tpu_custom_call.1} parent=1 // pred_region
      _
    $region17: #{tpu_custom_call.1} parent=1 // pred_fallthru
      _
    // Predicated region
    $region18: #{tpu_custom_call.1} parent=1 // pred_check
      _
    $region19: #{tpu_custom_call.1} parent=1 // pred_check_branch
      %47 = sbr.rel (0) target = $region21
    $region20: #{tpu_custom_call.1} parent=1 // pred_region
      %s49 = ssub.s32 16384, 16384
      %50 = vsyncadd [#allocation6], %s49
      %s51 = sshll.u32 [#allocation7], 4
      %s52 = int_to_ptr.vmem [resolvable:$true] %s51
      %57 = dma.hbm_to_vmem [thread:$0]  %s4, 16384, %s52, [#allocation6], 512, 512, 32
    $region21: #{tpu_custom_call.1} parent=1 // pred_fallthru
      _
    // Predicated region
    $region22: #{tpu_custom_call.1} parent=1 // pred_check
      _
    $region23: #{tpu_custom_call.1} parent=1 // pred_check_branch
      %59 = sbr.rel (0) target = $region25
    $region24: #{tpu_custom_call.1} parent=1 // pred_region
      _
    $region25: #{tpu_custom_call.1} parent=1 // pred_fallthru
      _
    // Predicated region
    $region26: #{tpu_custom_call.1} parent=1 // pred_check
      _
    $region27: #{tpu_custom_call.1} parent=1 // pred_check_branch
      %61 = sbr.rel (0) target = $region29
    $region28: #{tpu_custom_call.1} parent=1 // pred_region
      %s63 = ssub.s32 2048, 2048
      %64 = vsyncadd [#allocation9], %s63
      %s65 = sshll.u32 [#allocation8], 4
      %s66 = int_to_ptr.vmem [resolvable:$true] %s65
      %71 = dma.hbm_to_vmem [thread:$0]  %s6, 2048, %s66, [#allocation9], 128, 128, 8
    $region29: #{tpu_custom_call.1} parent=1 // pred_fallthru
      _
    // Predicated region
    $region30: #{tpu_custom_call.1} parent=1 // pred_check
      _
    $region31: #{tpu_custom_call.1} parent=1 // pred_check_branch
      %73 = sbr.rel (0) target = $region33
    $region32: #{tpu_custom_call.1} parent=1 // pred_region
      _
    $region33: #{tpu_custom_call.1} parent=1 // pred_fallthru
      _
    // Predicated region
    $region34: #{tpu_custom_call.1} parent=1 // pred_check
      _
    $region35: #{tpu_custom_call.1} parent=1 // pred_check_branch
      %75 = sbr.rel (0) target = $region37
    $region36: #{tpu_custom_call.1} parent=1 // pred_region
      %76 = dma.done [#allocation3], 128
    $region37: #{tpu_custom_call.1} parent=1 // pred_fallthru
      _
    // Predicated region
    $region38: #{tpu_custom_call.1} parent=1 // pred_check
      _
    $region39: #{tpu_custom_call.1} parent=1 // pred_check_branch
      %78 = sbr.rel (0) target = $region41
    $region40: #{tpu_custom_call.1} parent=1 // pred_region
      %79 = dma.done [#allocation6], 2048
    $region41: #{tpu_custom_call.1} parent=1 // pred_fallthru
      _
    // Predicated region
    $region42: #{tpu_custom_call.1} parent=1 // pred_check
      _
    $region43: #{tpu_custom_call.1} parent=1 // pred_check_branch
      %81 = sbr.rel (0) target = $region45
    $region44: #{tpu_custom_call.1} parent=1 // pred_region
      %82 = dma.done [#allocation6], 16384
    $region45: #{tpu_custom_call.1} parent=1 // pred_fallthru
      _
    // Predicated region
    $region46: #{tpu_custom_call.1} parent=1 // pred_check
      _
    $region47: #{tpu_custom_call.1} parent=1 // pred_check_branch
      %84 = sbr.rel (0) target = $region49
    $region48: #{tpu_custom_call.1} parent=1 // pred_region
      %85 = dma.done [#allocation9], 2048
    $region49: #{tpu_custom_call.1} parent=1 // pred_fallthru
      _
    %v86 = vld [vmem:[%s0] sm:$0xff]
    %v87 = vld [vmem:[#allocation2] sm:$0xff]
    %v88 = vld [vmem:[#allocation5] sm:$0xff]
    %v89 = vld [vmem:[#allocation5 + $0x8] sm:$0xff]
    %v90 = vld [vmem:[#allocation5 + $0x10] sm:$0xff]
    %v91 = vld [vmem:[#allocation5 + $0x18] sm:$0xff]
    %v92 = vld [vmem:[#allocation5 + $0x20] sm:$0xff]
    %v93 = vld [vmem:[#allocation5 + $0x28] sm:$0xff]
    %v94 = vld [vmem:[#allocation5 + $0x30] sm:$0xff]
    %v95 = vld [vmem:[#allocation5 + $0x38] sm:$0xff]
    %v96 = vld [vmem:[#allocation5 + $0x40] sm:$0xff]
    %v97 = vld [vmem:[#allocation5 + $0x48] sm:$0xff]
    %v98 = vld [vmem:[#allocation5 + $0x50] sm:$0xff]
    %v99 = vld [vmem:[#allocation5 + $0x58] sm:$0xff]
    %v100 = vld [vmem:[#allocation5 + $0x60] sm:$0xff]
    %v101 = vld [vmem:[#allocation5 + $0x68] sm:$0xff]
    %v102 = vld [vmem:[#allocation5 + $0x70] sm:$0xff]
    %v103 = vld [vmem:[#allocation5 + $0x78] sm:$0xff]
    %v104 = vld [vmem:[%s3] sm:$0x1]
    %v105 = vld [vmem:[#allocation7] sm:$0xff]
    %v106 = vld [vmem:[#allocation7 + $0x8] sm:$0xff]
    %v107 = vld [vmem:[#allocation7 + $0x10] sm:$0xff]
    %v108 = vld [vmem:[#allocation7 + $0x18] sm:$0xff]
    %v109 = vld [vmem:[#allocation7 + $0x20] sm:$0xff]
    %v110 = vld [vmem:[#allocation7 + $0x28] sm:$0xff]
    %v111 = vld [vmem:[#allocation7 + $0x30] sm:$0xff]
    %v112 = vld [vmem:[#allocation7 + $0x38] sm:$0xff]
    %v113 = vld [vmem:[#allocation7 + $0x40] sm:$0xff]
    %v114 = vld [vmem:[#allocation7 + $0x48] sm:$0xff]
    %v115 = vld [vmem:[#allocation7 + $0x50] sm:$0xff]
    %v116 = vld [vmem:[#allocation7 + $0x58] sm:$0xff]
    %v117 = vld [vmem:[#allocation7 + $0x60] sm:$0xff]
    %v118 = vld [vmem:[#allocation7 + $0x68] sm:$0xff]
    %v119 = vld [vmem:[#allocation7 + $0x70] sm:$0xff]
    %v120 = vld [vmem:[#allocation7 + $0x78] sm:$0xff]
    %v121 = vld [vmem:[#allocation7 + $0x80] sm:$0xff]
    %v122 = vld [vmem:[#allocation7 + $0x88] sm:$0xff]
    %v123 = vld [vmem:[#allocation7 + $0x90] sm:$0xff]
    %v124 = vld [vmem:[#allocation7 + $0x98] sm:$0xff]
    %v125 = vld [vmem:[#allocation7 + $0xa0] sm:$0xff]
    %v126 = vld [vmem:[#allocation7 + $0xa8] sm:$0xff]
    %v127 = vld [vmem:[#allocation7 + $0xb0] sm:$0xff]
    %v128 = vld [vmem:[#allocation7 + $0xb8] sm:$0xff]
    %v129 = vld [vmem:[#allocation7 + $0xc0] sm:$0xff]
    %v130 = vld [vmem:[#allocation7 + $0xc8] sm:$0xff]
    %v131 = vld [vmem:[#allocation7 + $0xd0] sm:$0xff]
    %v132 = vld [vmem:[#allocation7 + $0xd8] sm:$0xff]
    %v133 = vld [vmem:[#allocation7 + $0xe0] sm:$0xff]
    %v134 = vld [vmem:[#allocation7 + $0xe8] sm:$0xff]
    %v135 = vld [vmem:[#allocation7 + $0xf0] sm:$0xff]
    %v136 = vld [vmem:[#allocation7 + $0xf8] sm:$0xff]
    %v137 = vld [vmem:[#allocation7 + $0x100] sm:$0xff]
    %v138 = vld [vmem:[#allocation7 + $0x108] sm:$0xff]
    %v139 = vld [vmem:[#allocation7 + $0x110] sm:$0xff]
    %v140 = vld [vmem:[#allocation7 + $0x118] sm:$0xff]
    %v141 = vld [vmem:[#allocation7 + $0x120] sm:$0xff]
    %v142 = vld [vmem:[#allocation7 + $0x128] sm:$0xff]
    %v143 = vld [vmem:[#allocation7 + $0x130] sm:$0xff]
    %v144 = vld [vmem:[#allocation7 + $0x138] sm:$0xff]
    %v145 = vld [vmem:[#allocation7 + $0x140] sm:$0xff]
    %v146 = vld [vmem:[#allocation7 + $0x148] sm:$0xff]
    %v147 = vld [vmem:[#allocation7 + $0x150] sm:$0xff]
    %v148 = vld [vmem:[#allocation7 + $0x158] sm:$0xff]
    %v149 = vld [vmem:[#allocation7 + $0x160] sm:$0xff]
    %v150 = vld [vmem:[#allocation7 + $0x168] sm:$0xff]
    %v151 = vld [vmem:[#allocation7 + $0x170] sm:$0xff]
    %v152 = vld [vmem:[#allocation7 + $0x178] sm:$0xff]
    %v153 = vld [vmem:[#allocation7 + $0x180] sm:$0xff]
    %v154 = vld [vmem:[#allocation7 + $0x188] sm:$0xff]
    %v155 = vld [vmem:[#allocation7 + $0x190] sm:$0xff]
    %v156 = vld [vmem:[#allocation7 + $0x198] sm:$0xff]
    %v157 = vld [vmem:[#allocation7 + $0x1a0] sm:$0xff]
    %v158 = vld [vmem:[#allocation7 + $0x1a8] sm:$0xff]
    %v159 = vld [vmem:[#allocation7 + $0x1b0] sm:$0xff]
    %v160 = vld [vmem:[#allocation7 + $0x1b8] sm:$0xff]
    %v161 = vld [vmem:[#allocation7 + $0x1c0] sm:$0xff]
    %v162 = vld [vmem:[#allocation7 + $0x1c8] sm:$0xff]
    %v163 = vld [vmem:[#allocation7 + $0x1d0] sm:$0xff]
    %v164 = vld [vmem:[#allocation7 + $0x1d8] sm:$0xff]
    %v165 = vld [vmem:[#allocation7 + $0x1e0] sm:$0xff]
    %v166 = vld [vmem:[#allocation7 + $0x1e8] sm:$0xff]
    %v167 = vld [vmem:[#allocation7 + $0x1f0] sm:$0xff]
    %v168 = vld [vmem:[#allocation7 + $0x1f8] sm:$0xff]
    %v169 = vld [vmem:[#allocation7 + $0x200] sm:$0xff]
    %v170 = vld [vmem:[#allocation7 + $0x208] sm:$0xff]
    %v171 = vld [vmem:[#allocation7 + $0x210] sm:$0xff]
    %v172 = vld [vmem:[#allocation7 + $0x218] sm:$0xff]
    %v173 = vld [vmem:[#allocation7 + $0x220] sm:$0xff]
    %v174 = vld [vmem:[#allocation7 + $0x228] sm:$0xff]
    %v175 = vld [vmem:[#allocation7 + $0x230] sm:$0xff]
    %v176 = vld [vmem:[#allocation7 + $0x238] sm:$0xff]
    %v177 = vld [vmem:[#allocation7 + $0x240] sm:$0xff]
    %v178 = vld [vmem:[#allocation7 + $0x248] sm:$0xff]
    %v179 = vld [vmem:[#allocation7 + $0x250] sm:$0xff]
    %v180 = vld [vmem:[#allocation7 + $0x258] sm:$0xff]
    %v181 = vld [vmem:[#allocation7 + $0x260] sm:$0xff]
    %v182 = vld [vmem:[#allocation7 + $0x268] sm:$0xff]
    %v183 = vld [vmem:[#allocation7 + $0x270] sm:$0xff]
    %v184 = vld [vmem:[#allocation7 + $0x278] sm:$0xff]
    %v185 = vld [vmem:[#allocation7 + $0x280] sm:$0xff]
    %v186 = vld [vmem:[#allocation7 + $0x288] sm:$0xff]
    %v187 = vld [vmem:[#allocation7 + $0x290] sm:$0xff]
    %v188 = vld [vmem:[#allocation7 + $0x298] sm:$0xff]
    %v189 = vld [vmem:[#allocation7 + $0x2a0] sm:$0xff]
    %v190 = vld [vmem:[#allocation7 + $0x2a8] sm:$0xff]
    %v191 = vld [vmem:[#allocation7 + $0x2b0] sm:$0xff]
    %v192 = vld [vmem:[#allocation7 + $0x2b8] sm:$0xff]
    %v193 = vld [vmem:[#allocation7 + $0x2c0] sm:$0xff]
    %v194 = vld [vmem:[#allocation7 + $0x2c8] sm:$0xff]
    %v195 = vld [vmem:[#allocation7 + $0x2d0] sm:$0xff]
    %v196 = vld [vmem:[#allocation7 + $0x2d8] sm:$0xff]
    %v197 = vld [vmem:[#allocation7 + $0x2e0] sm:$0xff]
    %v198 = vld [vmem:[#allocation7 + $0x2e8] sm:$0xff]
    %v199 = vld [vmem:[#allocation7 + $0x2f0] sm:$0xff]
    %v200 = vld [vmem:[#allocation7 + $0x2f8] sm:$0xff]
    %v201 = vld [vmem:[#allocation7 + $0x300] sm:$0xff]
    %v202 = vld [vmem:[#allocation7 + $0x308] sm:$0xff]
    %v203 = vld [vmem:[#allocation7 + $0x310] sm:$0xff]
    %v204 = vld [vmem:[#allocation7 + $0x318] sm:$0xff]
    %v205 = vld [vmem:[#allocation7 + $0x320] sm:$0xff]
    %v206 = vld [vmem:[#allocation7 + $0x328] sm:$0xff]
    %v207 = vld [vmem:[#allocation7 + $0x330] sm:$0xff]
    %v208 = vld [vmem:[#allocation7 + $0x338] sm:$0xff]
    %v209 = vld [vmem:[#allocation7 + $0x340] sm:$0xff]
    %v210 = vld [vmem:[#allocation7 + $0x348] sm:$0xff]
    %v211 = vld [vmem:[#allocation7 + $0x350] sm:$0xff]
    %v212 = vld [vmem:[#allocation7 + $0x358] sm:$0xff]
    %v213 = vld [vmem:[#allocation7 + $0x360] sm:$0xff]
    %v214 = vld [vmem:[#allocation7 + $0x368] sm:$0xff]
    %v215 = vld [vmem:[#allocation7 + $0x370] sm:$0xff]
    %v216 = vld [vmem:[#allocation7 + $0x378] sm:$0xff]
    %v217 = vld [vmem:[#allocation7 + $0x380] sm:$0xff]
    %v218 = vld [vmem:[#allocation7 + $0x388] sm:$0xff]
    %v219 = vld [vmem:[#allocation7 + $0x390] sm:$0xff]
    %v220 = vld [vmem:[#allocation7 + $0x398] sm:$0xff]
    %v221 = vld [vmem:[#allocation7 + $0x3a0] sm:$0xff]
    %v222 = vld [vmem:[#allocation7 + $0x3a8] sm:$0xff]
    %v223 = vld [vmem:[#allocation7 + $0x3b0] sm:$0xff]
    %v224 = vld [vmem:[#allocation7 + $0x3b8] sm:$0xff]
    %v225 = vld [vmem:[#allocation7 + $0x3c0] sm:$0xff]
    %v226 = vld [vmem:[#allocation7 + $0x3c8] sm:$0xff]
    %v227 = vld [vmem:[#allocation7 + $0x3d0] sm:$0xff]
    %v228 = vld [vmem:[#allocation7 + $0x3d8] sm:$0xff]
    %v229 = vld [vmem:[#allocation7 + $0x3e0] sm:$0xff]
    %v230 = vld [vmem:[#allocation7 + $0x3e8] sm:$0xff]
    %v231 = vld [vmem:[#allocation7 + $0x3f0] sm:$0xff]
    %v232 = vld [vmem:[#allocation7 + $0x3f8] sm:$0xff]
    %v233 = vld [vmem:[%s5] sm:$0xf]
    %v234 = vld [vmem:[#allocation8] sm:$0xff]
    %v235 = vld [vmem:[#allocation8 + $0x8] sm:$0xff]
    %v236 = vld [vmem:[#allocation8 + $0x10] sm:$0xff]
    %v237 = vld [vmem:[#allocation8 + $0x18] sm:$0xff]
    %v238 = vld [vmem:[#allocation8 + $0x20] sm:$0xff]
    %v239 = vld [vmem:[#allocation8 + $0x28] sm:$0xff]
    %v240 = vld [vmem:[#allocation8 + $0x30] sm:$0xff]
    %v241 = vld [vmem:[#allocation8 + $0x38] sm:$0xff]
    %v242 = vld [vmem:[#allocation8 + $0x40] sm:$0xff]
    %v243 = vld [vmem:[#allocation8 + $0x48] sm:$0xff]
    %v244 = vld [vmem:[#allocation8 + $0x50] sm:$0xff]
    %v245 = vld [vmem:[#allocation8 + $0x58] sm:$0xff]
    %v246 = vld [vmem:[#allocation8 + $0x60] sm:$0xff]
    %v247 = vld [vmem:[#allocation8 + $0x68] sm:$0xff]
    %v248 = vld [vmem:[#allocation8 + $0x70] sm:$0xff]
    %v249 = vld [vmem:[#allocation8 + $0x78] sm:$0xff]
    %v250 = vld [vmem:[%s7] sm:$0x1]
    %v252 = vlaneseq
    %v253 = vshrl.u32 %v252, 7
    %v254 = vsub.s32 0, %v253
    %v255 = vrot.slane %v104, %v254
    %257 = vmatprep.subr.mxu0 0.0
    %258 = vmatpush1.msra.mxu0 %v88
    %259 = vmatprep.subr.mxu0 0.0
    %260 = vmatpush1.msra.mxu0 %v89
    %261 = vmatprep.subr.mxu0 0.0
    %262 = vmatpush1.msra.mxu0 %v90
    %263 = vmatprep.subr.mxu0 0.0
    %264 = vmatpush1.msra.mxu0 %v91
    %265 = vmatprep.subr.mxu0 0.0
    %266 = vmatpush1.msra.mxu0 %v92
    %267 = vmatprep.subr.mxu0 0.0
    %268 = vmatpush1.msra.mxu0 %v93
    %269 = vmatprep.subr.mxu0 0.0
    %270 = vmatpush1.msra.mxu0 %v94
    %271 = vmatprep.subr.mxu0 0.0
    %272 = vmatpush1.msra.mxu0 %v95
    %273 = vmatprep.subr.mxu0 0.0
    %274 = vmatpush1.msra.mxu0 %v96
    %275 = vmatprep.subr.mxu0 0.0
    %276 = vmatpush1.msra.mxu0 %v97
    %277 = vmatprep.subr.mxu0 0.0
    %278 = vmatpush1.msra.mxu0 %v98
    %279 = vmatprep.subr.mxu0 0.0
    %280 = vmatpush1.msra.mxu0 %v99
    %281 = vmatprep.subr.mxu0 0.0
    %282 = vmatpush1.msra.mxu0 %v100
    %283 = vmatprep.subr.mxu0 0.0
    %284 = vmatpush1.msra.mxu0 %v101
    %285 = vmatprep.subr.mxu0 0.0
    %286 = vmatpush1.msra.mxu0 %v102
    %287 = vmatprep.subr.mxu0 0.0
    %288 = vmatpush1.msra.mxu0 %v103
    %289 = vmatprep.subr.mxu0 0.0
    %290 = vmatpush1.msra.mxu0 0.0
    %291 = vmatprep.subr.mxu0 0.0
    %292 = vmatpush1.msra.mxu0 0.0
    %293 = vmatprep.subr.mxu0 0.0
    %294 = vmatpush1.msra.mxu0 0.0
    %295 = vmatprep.subr.mxu0 0.0
    %296 = vmatpush1.msra.mxu0 0.0
    %297 = vmatprep.subr.mxu0 0.0
    %298 = vmatpush1.msra.mxu0 0.0
    %299 = vmatprep.subr.mxu0 0.0
    %300 = vmatpush1.msra.mxu0 0.0
    %301 = vmatprep.subr.mxu0 0.0
    %302 = vmatpush1.msra.mxu0 0.0
    %303 = vmatprep.subr.mxu0 0.0
    %304 = vmatpush1.msra.mxu0 0.0
    %305 = vmatprep.subr.mxu0 0.0
    %306 = vmatpush1.msra.mxu0 0.0
    %307 = vmatprep.subr.mxu0 0.0
    %308 = vmatpush1.msra.mxu0 0.0
    %309 = vmatprep.subr.mxu0 0.0
    %310 = vmatpush1.msra.mxu0 0.0
    %311 = vmatprep.subr.mxu0 0.0
    %312 = vmatpush1.msra.mxu0 0.0
    %313 = vmatprep.subr.mxu0 0.0
    %314 = vmatpush1.msra.mxu0 0.0
    %315 = vmatprep.subr.mxu0 0.0
    %316 = vmatpush1.msra.mxu0 0.0
    %317 = vmatprep.subr.mxu0 0.0
    %318 = vmatpush1.msra.mxu0 0.0
    %319 = vmatprep.subr.mxu0 0.0
    %320 = vmatpush1.msra.mxu0 0.0
    %321 = vmatprep.mubr.f32.mxu0 0.0
    %322 = vmatmul.mubr.f32.gmra.mrb[0].mxu0 %v86
    %v323 = vpop.f32.mrb[0].mxu0
    %v324 = vadd.f32 %v255, %v323
    %v325 = vpop.f32.mrb[0].mxu0
    %326 = vdwg.mxu0
    %v327 = vmax.f32 %v324, 0.0
    %v329 = vlaneseq
    %v330 = vshrl.u32 %v329, 7
    %v331 = vsub.s32 0, %v330
    %v332 = vrot.slane %v233, %v331
    %v333 = vlaneseq
    %v334 = vshrl.u32 %v333, 7
    %v335 = vsub.s32 1, %v334
    %v336 = vrot.slane %v233, %v335
    %v337 = vlaneseq
    %v338 = vshrl.u32 %v337, 7
    %v339 = vsub.s32 2, %v338
    %v340 = vrot.slane %v233, %v339
    %v341 = vlaneseq
    %v342 = vshrl.u32 %v341, 7
    %v343 = vsub.s32 3, %v342
    %v344 = vrot.slane %v233, %v343
    %349 = vmatprep.subr.mxu0 %v106
    %350 = vmatpush1.msra.mxu0 %v105
    %351 = vmatprep.subr.mxu0 %v110
    %352 = vmatpush1.msra.mxu0 %v109
    %353 = vmatprep.subr.mxu0 %v114
    %354 = vmatpush1.msra.mxu0 %v113
    %355 = vmatprep.subr.mxu0 %v118
    %356 = vmatpush1.msra.mxu0 %v117
    %357 = vmatprep.subr.mxu0 %v122
    %358 = vmatpush1.msra.mxu0 %v121
    %359 = vmatprep.subr.mxu0 %v126
    %360 = vmatpush1.msra.mxu0 %v125
    %361 = vmatprep.subr.mxu0 %v130
    %362 = vmatpush1.msra.mxu0 %v129
    %363 = vmatprep.subr.mxu0 %v134
    %364 = vmatpush1.msra.mxu0 %v133
    %365 = vmatprep.subr.mxu0 %v138
    %366 = vmatpush1.msra.mxu0 %v137
    %367 = vmatprep.subr.mxu0 %v142
    %368 = vmatpush1.msra.mxu0 %v141
    %369 = vmatprep.subr.mxu0 %v146
    %370 = vmatpush1.msra.mxu0 %v145
    %371 = vmatprep.subr.mxu0 %v150
    %372 = vmatpush1.msra.mxu0 %v149
    %373 = vmatprep.subr.mxu0 %v154
    %374 = vmatpush1.msra.mxu0 %v153
    %375 = vmatprep.subr.mxu0 %v158
    %376 = vmatpush1.msra.mxu0 %v157
    %377 = vmatprep.subr.mxu0 %v162
    %378 = vmatpush1.msra.mxu0 %v161
    %379 = vmatprep.subr.mxu0 %v166
    %380 = vmatpush1.msra.mxu0 %v165
    %381 = vmatprep.subr.mxu0 %v170
    %382 = vmatpush1.msra.mxu0 %v169
    %383 = vmatprep.subr.mxu0 %v174
    %384 = vmatpush1.msra.mxu0 %v173
    %385 = vmatprep.subr.mxu0 %v178
    %386 = vmatpush1.msra.mxu0 %v177
    %387 = vmatprep.subr.mxu0 %v182
    %388 = vmatpush1.msra.mxu0 %v181
    %389 = vmatprep.subr.mxu0 %v186
    %390 = vmatpush1.msra.mxu0 %v185
    %391 = vmatprep.subr.mxu0 %v190
    %392 = vmatpush1.msra.mxu0 %v189
    %393 = vmatprep.subr.mxu0 %v194
    %394 = vmatpush1.msra.mxu0 %v193
    %395 = vmatprep.subr.mxu0 %v198
    %396 = vmatpush1.msra.mxu0 %v197
    %397 = vmatprep.subr.mxu0 %v202
    %398 = vmatpush1.msra.mxu0 %v201
    %399 = vmatprep.subr.mxu0 %v206
    %400 = vmatpush1.msra.mxu0 %v205
    %401 = vmatprep.subr.mxu0 %v210
    %402 = vmatpush1.msra.mxu0 %v209
    %403 = vmatprep.subr.mxu0 %v214
    %404 = vmatpush1.msra.mxu0 %v213
    %405 = vmatprep.subr.mxu0 %v218
    %406 = vmatpush1.msra.mxu0 %v217
    %407 = vmatprep.subr.mxu0 %v222
    %408 = vmatpush1.msra.mxu0 %v221
    %409 = vmatprep.subr.mxu0 %v226
    %410 = vmatpush1.msra.mxu0 %v225
    %411 = vmatprep.subr.mxu0 %v230
    %412 = vmatpush1.msra.mxu0 %v229
    %413 = vmatprep.mubr.f32.mxu0 %v87
    %414 = vmatmul.mubr.f32.gmra.mrb[0].mxu0 %v327
    %v415 = vpop.f32.mrb[0].mxu0
    %v416 = vadd.f32 %v332, %v415
    %v417 = vpop.f32.mrb[0].mxu0
    %v418 = vadd.f32 %v336, %v417
    %419 = vdwg.mxu0
    %420 = vmatprep.subr.mxu0 %v108
    %421 = vmatpush1.msra.mxu0 %v107
    %422 = vmatprep.subr.mxu0 %v112
    %423 = vmatpush1.msra.mxu0 %v111
    %424 = vmatprep.subr.mxu0 %v116
    %425 = vmatpush1.msra.mxu0 %v115
    %426 = vmatprep.subr.mxu0 %v120
    %427 = vmatpush1.msra.mxu0 %v119
    %428 = vmatprep.subr.mxu0 %v124
    %429 = vmatpush1.msra.mxu0 %v123
    %430 = vmatprep.subr.mxu0 %v128
    %431 = vmatpush1.msra.mxu0 %v127
    %432 = vmatprep.subr.mxu0 %v132
    %433 = vmatpush1.msra.mxu0 %v131
    %434 = vmatprep.subr.mxu0 %v136
    %435 = vmatpush1.msra.mxu0 %v135
    %436 = vmatprep.subr.mxu0 %v140
    %437 = vmatpush1.msra.mxu0 %v139
    %438 = vmatprep.subr.mxu0 %v144
    %439 = vmatpush1.msra.mxu0 %v143
    %440 = vmatprep.subr.mxu0 %v148
    %441 = vmatpush1.msra.mxu0 %v147
    %442 = vmatprep.subr.mxu0 %v152
    %443 = vmatpush1.msra.mxu0 %v151
    %444 = vmatprep.subr.mxu0 %v156
    %445 = vmatpush1.msra.mxu0 %v155
    %446 = vmatprep.subr.mxu0 %v160
    %447 = vmatpush1.msra.mxu0 %v159
    %448 = vmatprep.subr.mxu0 %v164
    %449 = vmatpush1.msra.mxu0 %v163
    %450 = vmatprep.subr.mxu0 %v168
    %451 = vmatpush1.msra.mxu0 %v167
    %452 = vmatprep.subr.mxu0 %v172
    %453 = vmatpush1.msra.mxu0 %v171
    %454 = vmatprep.subr.mxu0 %v176
    %455 = vmatpush1.msra.mxu0 %v175
    %456 = vmatprep.subr.mxu0 %v180
    %457 = vmatpush1.msra.mxu0 %v179
    %458 = vmatprep.subr.mxu0 %v184
    %459 = vmatpush1.msra.mxu0 %v183
    %460 = vmatprep.subr.mxu0 %v188
    %461 = vmatpush1.msra.mxu0 %v187
    %462 = vmatprep.subr.mxu0 %v192
    %463 = vmatpush1.msra.mxu0 %v191
    %464 = vmatprep.subr.mxu0 %v196
    %465 = vmatpush1.msra.mxu0 %v195
    %466 = vmatprep.subr.mxu0 %v200
    %467 = vmatpush1.msra.mxu0 %v199
    %468 = vmatprep.subr.mxu0 %v204
    %469 = vmatpush1.msra.mxu0 %v203
    %470 = vmatprep.subr.mxu0 %v208
    %471 = vmatpush1.msra.mxu0 %v207
    %472 = vmatprep.subr.mxu0 %v212
    %473 = vmatpush1.msra.mxu0 %v211
    %474 = vmatprep.subr.mxu0 %v216
    %475 = vmatpush1.msra.mxu0 %v215
    %476 = vmatprep.subr.mxu0 %v220
    %477 = vmatpush1.msra.mxu0 %v219
    %478 = vmatprep.subr.mxu0 %v224
    %479 = vmatpush1.msra.mxu0 %v223
    %480 = vmatprep.subr.mxu0 %v228
    %481 = vmatpush1.msra.mxu0 %v227
    %482 = vmatprep.subr.mxu0 %v232
    %483 = vmatpush1.msra.mxu0 %v231
    %484 = vmatprep.mubr.f32.mxu0 %v87
    %485 = vmatmul.mubr.f32.gmra.mrb[0].mxu0 %v327
    %v486 = vpop.f32.mrb[0].mxu0
    %v487 = vadd.f32 %v340, %v486
    %v488 = vpop.f32.mrb[0].mxu0
    %v489 = vadd.f32 %v344, %v488
    %490 = vdwg.mxu0
    %v491 = vxor.u32 %v416, 2147483648
    %v492 = vmul.f32 %v491, 1.442695
    %v493 = vpow.pop %v492
    %v494 = vadd.f32 %v493, 1.0
    %v495 = vrcp.pop %v494
    %v496 = vmul.f32 1.0, %v495
    %v497 = vxor.u32 %v418, 2147483648
    %v498 = vmul.f32 %v497, 1.442695
    %v499 = vpow.pop %v498
    %v500 = vadd.f32 %v499, 1.0
    %v501 = vrcp.pop %v500
    %v502 = vmul.f32 1.0, %v501
    %v503 = vmul.f32 %v496, %v489
    %v504 = vadd.f32 %v487, %v503
    %v505 = vtanh.pop %v504
    %v506 = vsub.f32 1.0, %v502
    %v507 = vmul.f32 %v506, %v505
    %v508 = vmul.f32 %v502, %v87
    %v509 = vadd.f32 %v507, %v508
    %v511 = vlaneseq
    %v512 = vshrl.u32 %v511, 7
    %v513 = vsub.s32 0, %v512
    %v514 = vrot.slane %v250, %v513
    %516 = vmatprep.subr.mxu0 0.0
    %517 = vmatpush1.msra.mxu0 %v234
    %518 = vmatprep.subr.mxu0 0.0
    %519 = vmatpush1.msra.mxu0 %v235
    %520 = vmatprep.subr.mxu0 0.0
    %521 = vmatpush1.msra.mxu0 %v236
    %522 = vmatprep.subr.mxu0 0.0
    %523 = vmatpush1.msra.mxu0 %v237
    %524 = vmatprep.subr.mxu0 0.0
    %525 = vmatpush1.msra.mxu0 %v238
    %526 = vmatprep.subr.mxu0 0.0
    %527 = vmatpush1.msra.mxu0 %v239
    %528 = vmatprep.subr.mxu0 0.0
    %529 = vmatpush1.msra.mxu0 %v240
    %530 = vmatprep.subr.mxu0 0.0
    %531 = vmatpush1.msra.mxu0 %v241
    %532 = vmatprep.subr.mxu0 0.0
    %533 = vmatpush1.msra.mxu0 %v242
    %534 = vmatprep.subr.mxu0 0.0
    %535 = vmatpush1.msra.mxu0 %v243
    %536 = vmatprep.subr.mxu0 0.0
    %537 = vmatpush1.msra.mxu0 %v244
    %538 = vmatprep.subr.mxu0 0.0
    %539 = vmatpush1.msra.mxu0 %v245
    %540 = vmatprep.subr.mxu0 0.0
    %541 = vmatpush1.msra.mxu0 %v246
    %542 = vmatprep.subr.mxu0 0.0
    %543 = vmatpush1.msra.mxu0 %v247
    %544 = vmatprep.subr.mxu0 0.0
    %545 = vmatpush1.msra.mxu0 %v248
    %546 = vmatprep.subr.mxu0 0.0
    %547 = vmatpush1.msra.mxu0 %v249
    %548 = vmatprep.subr.mxu0 0.0
    %549 = vmatpush1.msra.mxu0 0.0
    %550 = vmatprep.subr.mxu0 0.0
    %551 = vmatpush1.msra.mxu0 0.0
    %552 = vmatprep.subr.mxu0 0.0
    %553 = vmatpush1.msra.mxu0 0.0
    %554 = vmatprep.subr.mxu0 0.0
    %555 = vmatpush1.msra.mxu0 0.0
    %556 = vmatprep.subr.mxu0 0.0
    %557 = vmatpush1.msra.mxu0 0.0
    %558 = vmatprep.subr.mxu0 0.0
    %559 = vmatpush1.msra.mxu0 0.0
    %560 = vmatprep.subr.mxu0 0.0
    %561 = vmatpush1.msra.mxu0 0.0
    %562 = vmatprep.subr.mxu0 0.0
    %563 = vmatpush1.msra.mxu0 0.0
    %564 = vmatprep.subr.mxu0 0.0
    %565 = vmatpush1.msra.mxu0 0.0
    %566 = vmatprep.subr.mxu0 0.0
    %567 = vmatpush1.msra.mxu0 0.0
    %568 = vmatprep.subr.mxu0 0.0
    %569 = vmatpush1.msra.mxu0 0.0
    %570 = vmatprep.subr.mxu0 0.0
    %571 = vmatpush1.msra.mxu0 0.0
    %572 = vmatprep.subr.mxu0 0.0
    %573 = vmatpush1.msra.mxu0 0.0
    %574 = vmatprep.subr.mxu0 0.0
    %575 = vmatpush1.msra.mxu0 0.0
    %576 = vmatprep.subr.mxu0 0.0
    %577 = vmatpush1.msra.mxu0 0.0
    %578 = vmatprep.subr.mxu0 0.0
    %579 = vmatpush1.msra.mxu0 0.0
    %580 = vmatprep.mubr.f32.mxu0 0.0
    %581 = vmatmul.mubr.f32.gmra.mrb[0].mxu0 %v509
    %v582 = vpop.f32.mrb[0].mxu0
    %v583 = vadd.f32 %v514, %v582
    %v584 = vpop.f32.mrb[0].mxu0
    %585 = vdwg.mxu0
    %586 = vst [vmem:[#allocation10] sm:$0xff] %v583
    %587 = vst [vmem:[#allocation11] sm:$0xff] %v509
    // Predicated region
    $region50: #{tpu_custom_call.1} parent=1 // pred_check
      _
    $region51: #{tpu_custom_call.1} parent=1 // pred_check_branch
      %589 = sbr.rel (0) target = $region53
    $region52: #{tpu_custom_call.1} parent=1 // pred_region
      %s591 = ssub.s32 128, 128
      %592 = vsyncadd [#allocation4], %s591
      %s594 = sshll.u32 [#allocation10], 4
      %s595 = int_to_ptr.vmem [resolvable:$true] %s594
      %597 = dma.vmem_to_hbm [thread:$0]  %s595, 128, %s8, [#allocation4]
    $region53: #{tpu_custom_call.1} parent=1 // pred_fallthru
      _
    // Predicated region
    $region54: #{tpu_custom_call.1} parent=1 // pred_check
      _
    $region55: #{tpu_custom_call.1} parent=1 // pred_check_branch
      %599 = sbr.rel (0) target = $region57
    $region56: #{tpu_custom_call.1} parent=1 // pred_region
      %s601 = ssub.s32 128, 128
      %602 = vsyncadd [#allocation12], %s601
      %s604 = sshll.u32 [#allocation11], 4
      %s605 = int_to_ptr.vmem [resolvable:$true] %s604
      %607 = dma.vmem_to_hbm [thread:$0]  %s605, 128, %s9, [#allocation12]
    $region57: #{tpu_custom_call.1} parent=1 // pred_fallthru
      _
    // Predicated region
    $region58: #{tpu_custom_call.1} parent=1 // pred_check
      _
    $region59: #{tpu_custom_call.1} parent=1 // pred_check_branch
      %609 = sbr.rel (0) target = $region61
    $region60: #{tpu_custom_call.1} parent=1 // pred_region
      %610 = dma.done [#allocation4], 128
    $region61: #{tpu_custom_call.1} parent=1 // pred_fallthru
      _
    // Predicated region
    $region62: #{tpu_custom_call.1} parent=1 // pred_check
      _
    $region63: #{tpu_custom_call.1} parent=1 // pred_check_branch
      %612 = sbr.rel (0) target = $region65
    $region64: #{tpu_custom_call.1} parent=1 // pred_region
      %613 = dma.done [#allocation12], 128
    $region65: #{tpu_custom_call.1} parent=1 // pred_fallthru
      _
    %614 = vsyncpa [#allocation3], 1
    %615 = vsyncpa [#allocation6], 1
    %616 = vsyncpa [#allocation9], 1
    %617 = vsyncpa [#allocation4], 1
    %618 = vsyncpa [#allocation12], 1

</llo_original>
